<compile_context>
chip_gen: v7x
topology: tpu7x:2x2x1
jax: 0.10.0
libtpu: 0.0.40
codegen_flags: <defaults>
</compile_context>

<pallas_src>
import numpy as np
import jax
import jax.numpy as jnp
from jax.experimental import pallas as pl
from jax.experimental.pallas import tpu as pltpu


_SQRT_HALF = 0.7071067811865476


# ------------------------------ kernel helpers --------------------------------
def _gelu_erf(x):
    """Exact (erf-based) GELU matching nn.GELU() default.

    erf via Abramowitz & Stegun 7.1.26 (|err| ~ 1.5e-7).  Structured to keep the
    number of simultaneously-live full-tile f32 temporaries small and to push the
    reciprocal and exp onto the EUP (free slot) instead of the VALU.
    """
    z = jnp.abs(x) * _SQRT_HALF                      # |x| / sqrt(2)
    t = pl.reciprocal(1.0 + 0.3275911 * z, approx=True)   # EUP, not a VALU divide
    # Horner chain with a single accumulator (minimises live temporaries).
    p = jnp.float32(1.061405429)
    p = p * t - 1.453152027
    p = p * t + 1.421413741
    p = p * t - 0.284496736
    p = p * t + 0.254829592
    p = p * t
    erf_abs = 1.0 - p * jnp.exp(-z * z)              # erf(|x|/sqrt(2)) in [0, 1)
    cdf = 0.5 + 0.5 * jnp.where(x >= 0.0, erf_abs, -erf_abs)   # Phi(x)
    return x * cdf


# ------------------------------ Pallas kernel ----------------------------------
def _mlp_kernel(x_ref, w1_ref, b1_ref, w2_ref, b2_ref, o_ref):
    # fc1: (TM, D_in) @ (D_in, H) -> f32 accumulate. bf16 operands => single-pass MXU.
    x = x_ref[...].astype(jnp.bfloat16)
    h = jnp.dot(x, w1_ref[...], preferred_element_type=jnp.float32) + b1_ref[...]
    h = _gelu_erf(h)                                                   # (TM, H), f32
    # fc2: (TM, H) @ (H, D_out) -> f32 accumulate.
    o = jnp.dot(h.astype(jnp.bfloat16), w2_ref[...],
                preferred_element_type=jnp.float32) + b2_ref[...]
    o_ref[...] = o.astype(o_ref.dtype)
    # Dropout with drop=0.0 / eval mode is the identity -> nothing to do.


# ------------------------------ wrapper ----------------------------------------
def _round_up(x, m):
    return ((x + m - 1) // m) * m


def _vmem_budget_bytes(tm, d_in, hidden, d_out):
    """Explicit scoped-VMEM budget (bytes) for this kernel's residency scheme."""
    f32, bf16 = 4, 2
    x_tiles = 2 * tm * d_in * f32                       # double-buffered input rows
    o_tiles = 2 * tm * d_out * f32                      # double-buffered output rows
    weights = 2 * (d_in * hidden + hidden * d_out) * bf16   # resident weights (x2 buffers)
    biases = 2 * (hidden + d_out) * f32
    act = 4 * tm * hidden * f32                         # h + GELU temporaries headroom
    raw = x_tiles + o_tiles + weights + biases + act
    # 2x margin + 2 MiB, floored at 8 MiB, capped at v7x physical (64 MiB).
    return int(min(max(2 * raw + (2 << 20), 8 << 20), 64 << 20))


def mlp_forward(x, w1, b1, w2, b2, *, block_m=128):
    """Mlp.forward.  x: (..., d_in); w1: (d_in, hidden); w2: (hidden, d_out).

    Weights are stored transposed w.r.t. PyTorch's nn.Linear (i.e. (in, out)),
    so fc(x) = x @ w + b.  Matmuls run as bf16 MXU passes with f32 accumulation.
    """
    d_in = x.shape[-1]
    hidden = w1.shape[1]
    d_out = w2.shape[1]
    lead = x.shape[:-1]
    m = int(np.prod(lead)) if lead else 1

    # Fold every leading dim (batch, tokens, ...) into the matmul M dimension.
    x2 = x.reshape(m, d_in)

    # dtype-aware sublane granularity: 8 for f32, 16 for bf16, 32 for int8/fp8.
    sublane = max(8, 32 // jnp.dtype(x.dtype).itemsize)
    # Aim for >= 2 row tiles whenever possible so v7x's two TensorCores both get
    # work via the "parallel" axis; cap at block_m to bound vreg pressure.
    tm = max(sublane, min(block_m, _round_up(-(-m // 2), sublane)))
    m_pad = _round_up(m, tm)
    if m_pad != m:
        x2 = jnp.pad(x2, ((0, m_pad - m), (0, 0)))

    # bf16 weights: halves resident-weight VMEM/DMA, guarantees single-pass MXU.
    w1b = w1.astype(jnp.bfloat16)
    w2b = w2.astype(jnp.bfloat16)
    b1f = jnp.asarray(b1, jnp.float32).reshape(1, hidden)
    b2f = jnp.asarray(b2, jnp.float32).reshape(1, d_out)

    vmem_bytes = _vmem_budget_bytes(tm, d_in, hidden, d_out)

    out = pl.pallas_call(
        _mlp_kernel,
        grid=(m_pad // tm,),
        in_specs=[
            pl.BlockSpec((tm, d_in), lambda i: (i, 0)),       # x row tile
            pl.BlockSpec((d_in, hidden), lambda i: (0, 0)),   # fc1 weight (resident)
            pl.BlockSpec((1, hidden), lambda i: (0, 0)),      # fc1 bias
            pl.BlockSpec((hidden, d_out), lambda i: (0, 0)),  # fc2 weight (resident)
            pl.BlockSpec((1, d_out), lambda i: (0, 0)),       # fc2 bias
        ],
        out_specs=pl.BlockSpec((tm, d_out), lambda i: (i, 0)),
        out_shape=jax.ShapeDtypeStruct((m_pad, d_out), x.dtype),
        compiler_params=pltpu.CompilerParams(
            dimension_semantics=("parallel",),   # row tiles are independent (megacore)
            vmem_limit_bytes=vmem_bytes),
    )(x2, w1b, b1f, w2b, b2f)

    return out[:m].reshape(*lead, d_out)


# ------------------------------ plain-JAX reference ----------------------------
def mlp_reference(x, w1, b1, w2, b2):
    h = x @ w1 + b1.reshape(-1)
    h = 0.5 * h * (1.0 + jax.scipy.special.erf(h * _SQRT_HALF))
    return h @ w2 + b2.reshape(-1)


# ------------------------------------ main --------------------------------------
if __name__ == "__main__":
    key = jax.random.PRNGKey(0)
    kx, k1, k2, k3, k4 = jax.random.split(key, 5)

    # Shapes consistent with the ViT block this Mlp lives in:
    # (batch, tokens, embed_dim) = (2, 9, 32); hidden = mlp_ratio * embed_dim = 128.
    B, N, D_IN = 2, 9, 32
    HIDDEN = int(4.0 * D_IN)
    D_OUT = D_IN

    x = jax.random.normal(kx, (B, N, D_IN), jnp.float32)
    w1 = 0.02 * jax.random.normal(k1, (D_IN, HIDDEN), jnp.float32)
    b1 = 0.02 * jax.random.normal(k2, (1, HIDDEN), jnp.float32)
    w2 = 0.02 * jax.random.normal(k3, (HIDDEN, D_OUT), jnp.float32)
    b2 = 0.02 * jax.random.normal(k4, (1, D_OUT), jnp.float32)

    out = jax.jit(mlp_forward)(x, w1, b1, w2, b2)
    out = jax.block_until_ready(out)

    ref = mlp_reference(x, w1, b1, w2, b2)
    assert out.shape == (B, N, D_OUT), out.shape
    assert bool(jnp.all(jnp.isfinite(out)))
    # bf16-operand MXU matmuls (f32 accumulation) vs. the f32 XLA reference: values
    # here are O(1e-2) and the bf16 error is a few e-4, well inside 2e-3.
    assert bool(jnp.allclose(out, ref, atol=2e-3, rtol=2e-3)), \
        float(jnp.max(jnp.abs(out - ref)))
    print("KERNEL_OK")
</pallas_src>

<mosaic_0001>
module attributes {stable_mosaic.version = 11 : i64} {
  func.func @_mlp_kernel(%arg0: i32, %arg1: memref<16x32xf32, #tpu.memory_space<vmem>>, %arg2: memref<32x128xbf16, #tpu.memory_space<vmem>>, %arg3: memref<1x128xf32, #tpu.memory_space<vmem>>, %arg4: memref<128x32xbf16, #tpu.memory_space<vmem>>, %arg5: memref<1x32xf32, #tpu.memory_space<vmem>>, %arg6: memref<16x32xf32, #tpu.memory_space<vmem>>) attributes {dimension_semantics = [#tpu.dimension_semantics<parallel>], iteration_bounds = array<i64: 2>, scalar_prefetch = 0 : i64, scratch_operands = 0 : i64, tpu.core_type = #tpu.core_type<tc>, window_params = [{transform_indices = @transform_0, window_bounds = array<i64: 16, 32>}, {pipeline_mode = #tpu.pipeline_mode<synchronous>, transform_indices = @transform_1, window_bounds = array<i64: 32, 128>}, {pipeline_mode = #tpu.pipeline_mode<synchronous>, transform_indices = @transform_2, window_bounds = array<i64: 1, 128>}, {pipeline_mode = #tpu.pipeline_mode<synchronous>, transform_indices = @transform_3, window_bounds = array<i64: 128, 32>}, {pipeline_mode = #tpu.pipeline_mode<synchronous>, transform_indices = @transform_4, window_bounds = array<i64: 1, 32>}, {transform_indices = @transform_5, window_bounds = array<i64: 16, 32>}]} {
    %c0 = arith.constant 0 : index
    %c0_0 = arith.constant 0 : index
    %0 = vector.load %arg1[%c0, %c0_0] : memref<16x32xf32, #tpu.memory_space<vmem>>, vector<16x32xf32>
    %1 = arith.truncf %0 : vector<16x32xf32> to vector<16x32xbf16>
    %c0_1 = arith.constant 0 : index
    %c0_2 = arith.constant 0 : index
    %2 = vector.load %arg2[%c0_1, %c0_2] : memref<32x128xbf16, #tpu.memory_space<vmem>>, vector<32x128xbf16>
    %cst = arith.constant dense<0.000000e+00> : vector<16x128xf32>
    %3 = tpu.matmul %1, %2, %cst {dimension_numbers = #tpu.dot_dimension_numbers<[1], [0], [0], [1], [0, 0, 1, 1], [], []>} : vector<16x32xbf16>, vector<32x128xbf16>, vector<16x128xf32> -> vector<16x128xf32>
    %c0_3 = arith.constant 0 : index
    %c0_4 = arith.constant 0 : index
    %4 = vector.load %arg3[%c0_3, %c0_4] : memref<1x128xf32, #tpu.memory_space<vmem>>, vector<1x128xf32>
    %5 = vector.broadcast %4 : vector<1x128xf32> to vector<16x128xf32>
    %6 = arith.addf %3, %5 : vector<16x128xf32>
    %7 = math.absf %6 : vector<16x128xf32>
    %cst_5 = arith.constant 0.707106769 : f32
    %8 = vector.broadcast %cst_5 : f32 to vector<16x128xf32>
    %9 = arith.mulf %7, %8 : vector<16x128xf32>
    %cst_6 = arith.constant 0.327591091 : f32
    %10 = vector.broadcast %cst_6 : f32 to vector<16x128xf32>
    %11 = arith.mulf %10, %9 : vector<16x128xf32>
    %cst_7 = arith.constant 1.000000e+00 : f32
    %12 = vector.broadcast %cst_7 : f32 to vector<16x128xf32>
    %13 = arith.addf %12, %11 : vector<16x128xf32>
    %14 = tpu.reciprocal %13 {approx = true} : vector<16x128xf32> -> vector<16x128xf32>
    %cst_8 = arith.constant 1.06140542 : f32
    %15 = vector.broadcast %cst_8 : f32 to vector<16x128xf32>
    %16 = arith.mulf %15, %14 : vector<16x128xf32>
    %cst_9 = arith.constant 1.45315206 : f32
    %17 = vector.broadcast %cst_9 : f32 to vector<16x128xf32>
    %18 = arith.subf %16, %17 : vector<16x128xf32>
    %19 = arith.mulf %18, %14 : vector<16x128xf32>
    %cst_10 = arith.constant 1.42141378 : f32
    %20 = vector.broadcast %cst_10 : f32 to vector<16x128xf32>
    %21 = arith.addf %19, %20 : vector<16x128xf32>
    %22 = arith.mulf %21, %14 : vector<16x128xf32>
    %cst_11 = arith.constant 0.284496725 : f32
    %23 = vector.broadcast %cst_11 : f32 to vector<16x128xf32>
    %24 = arith.subf %22, %23 : vector<16x128xf32>
    %25 = arith.mulf %24, %14 : vector<16x128xf32>
    %cst_12 = arith.constant 0.254829586 : f32
    %26 = vector.broadcast %cst_12 : f32 to vector<16x128xf32>
    %27 = arith.addf %25, %26 : vector<16x128xf32>
    %28 = arith.mulf %27, %14 : vector<16x128xf32>
    %cst_13 = arith.constant 0.000000e+00 : f32
    %29 = vector.broadcast %cst_13 : f32 to vector<16x128xf32>
    %30 = arith.subf %29, %9 : vector<16x128xf32>
    %31 = arith.mulf %30, %9 : vector<16x128xf32>
    %32 = math.exp %31 : vector<16x128xf32>
    %33 = arith.mulf %28, %32 : vector<16x128xf32>
    %cst_14 = arith.constant 1.000000e+00 : f32
    %34 = vector.broadcast %cst_14 : f32 to vector<16x128xf32>
    %35 = arith.subf %34, %33 : vector<16x128xf32>
    %cst_15 = arith.constant 0.000000e+00 : f32
    %36 = vector.broadcast %cst_15 : f32 to vector<16x128xf32>
    %37 = arith.cmpf oge, %6, %36 : vector<16x128xf32>
    %cst_16 = arith.constant 0.000000e+00 : f32
    %38 = vector.broadcast %cst_16 : f32 to vector<16x128xf32>
    %39 = arith.subf %38, %35 : vector<16x128xf32>
    %40 = arith.select %37, %35, %39 : vector<16x128xi1>, vector<16x128xf32>
    %cst_17 = arith.constant 5.000000e-01 : f32
    %41 = vector.broadcast %cst_17 : f32 to vector<16x128xf32>
    %42 = arith.mulf %41, %40 : vector<16x128xf32>
    %cst_18 = arith.constant 5.000000e-01 : f32
    %43 = vector.broadcast %cst_18 : f32 to vector<16x128xf32>
    %44 = arith.addf %43, %42 : vector<16x128xf32>
    %45 = arith.mulf %6, %44 : vector<16x128xf32>
    %46 = arith.truncf %45 : vector<16x128xf32> to vector<16x128xbf16>
    %c0_19 = arith.constant 0 : index
    %c0_20 = arith.constant 0 : index
    %47 = vector.load %arg4[%c0_19, %c0_20] : memref<128x32xbf16, #tpu.memory_space<vmem>>, vector<128x32xbf16>
    %cst_21 = arith.constant dense<0.000000e+00> : vector<16x32xf32>
    %48 = tpu.matmul %46, %47, %cst_21 {dimension_numbers = #tpu.dot_dimension_numbers<[1], [0], [0], [1], [0, 0, 1, 1], [], []>} : vector<16x128xbf16>, vector<128x32xbf16>, vector<16x32xf32> -> vector<16x32xf32>
    %c0_22 = arith.constant 0 : index
    %c0_23 = arith.constant 0 : index
    %49 = vector.load %arg5[%c0_22, %c0_23] : memref<1x32xf32, #tpu.memory_space<vmem>>, vector<1x32xf32>
    %50 = vector.broadcast %49 : vector<1x32xf32> to vector<16x32xf32>
    %51 = arith.addf %48, %50 : vector<16x32xf32>
    %c0_24 = arith.constant 0 : index
    %c0_25 = arith.constant 0 : index
    %52 = vector.load %arg6[%c0_24, %c0_25] : memref<16x32xf32, #tpu.memory_space<vmem>>, vector<16x32xf32>
    tpu.vector_store %arg6[%c0_24, %c0_25], %51 {strides = array<i32>} : memref<16x32xf32, #tpu.memory_space<vmem>>, vector<16x32xf32>,
    return
  }
  func.func @transform_0(%arg0: i32) -> (i32, i32) {
    %c0_i32 = arith.constant 0 : i32
    %c0_i32_0 = arith.constant 0 : i32
    return %arg0, %c0_i32 : i32, i32
  }
  func.func @transform_1(%arg0: i32) -> (i32, i32) {
    %c0_i32 = arith.constant 0 : i32
    %c0_i32_0 = arith.constant 0 : i32
    %c0_i32_1 = arith.constant 0 : i32
    return %c0_i32, %c0_i32_0 : i32, i32
  }
  func.func @transform_2(%arg0: i32) -> (i32, i32) {
    %c0_i32 = arith.constant 0 : i32
    %c0_i32_0 = arith.constant 0 : i32
    %c0_i32_1 = arith.constant 0 : i32
    return %c0_i32, %c0_i32_0 : i32, i32
  }
  func.func @transform_3(%arg0: i32) -> (i32, i32) {
    %c0_i32 = arith.constant 0 : i32
    %c0_i32_0 = arith.constant 0 : i32
    %c0_i32_1 = arith.constant 0 : i32
    return %c0_i32, %c0_i32_0 : i32, i32
  }
  func.func @transform_4(%arg0: i32) -> (i32, i32) {
    %c0_i32 = arith.constant 0 : i32
    %c0_i32_0 = arith.constant 0 : i32
    %c0_i32_1 = arith.constant 0 : i32
    return %c0_i32, %c0_i32_0 : i32, i32
  }
  func.func @transform_5(%arg0: i32) -> (i32, i32) {
    %c0_i32 = arith.constant 0 : i32
    %c0_i32_0 = arith.constant 0 : i32
    return %arg0, %c0_i32 : i32, i32
  }
}

</mosaic_0001>

<llo_original>
// kernel: mlp_forward.1
$region0: #{mlp_forward.1}
  #allocation0 [shape = 'u32[]', space=smem, size = 0x4, offset = 0x4, fixed_abs, tag = 'smem constant byte address 0x4 - core index']
  #allocation1 [shape = 'u32[144,128]{1,0:T(1,128)}', space=vmem, size = 0x12000, scoped, tag = 'internal scratch']
  %s0 = inlined_call_operand.vmem [shape: f32[32,32], index: 0, kind: input, shape index: {}]
  %s1 = inlined_call_operand.vmem [shape: bf16[32,128], index: 1, kind: input, shape index: {}]
  %s2 = inlined_call_operand.vmem [shape: f32[1,128], index: 2, kind: input, shape index: {}]
  %s3 = inlined_call_operand.vmem [shape: bf16[128,32], index: 3, kind: input, shape index: {}]
  %s4 = inlined_call_operand.vmem [shape: f32[1,32], index: 4, kind: input, shape index: {}]
  %s5 = inlined_call_operand.vmem [shape: f32[32,32], index: 5, kind: output, shape index: {}]
  %s6 = sld [smem:[#allocation0]]
  $region53: #{mlp_forward.1} parent=0
    _
  %s8 = ssub.s32 1, %s6
  %s9 = scalar_select 0, %s8, %s6
  loop: start=0, step=1, limit=4
  $region2: #{mlp_forward.1} parent=0 // loop_pre_header
    _
  $region3: #{mlp_forward.1} parent=0 // loop_header
    %s11 = sphi 0, %s15
    %p12 = scmp.ge.s32.totalorder %s11, 4
    %s21 = sphi 0, %s23
    %s24 = sphi 0, %s21
    %s25 = sphi 0, %s24
    %s41 = sphi 0, %s25
    %s45 = sphi 0, %s45
    %s47 = sphi 0, %s45
    %s48 = sphi 0, %s47
    %s62 = sphi 0, %s48
    %s66 = sphi 0, %s66
    %s68 = sphi 0, %s66
    %s69 = sphi 0, %s68
    %s83 = sphi 0, %s69
    %s87 = sphi 0, %s87
    %s89 = sphi 0, %s87
    %s90 = sphi 0, %s89
    %s104 = sphi 0, %s90
    %s108 = sphi 0, %s108
    %s110 = sphi 0, %s108
    %s111 = sphi 0, %s110
    %s125 = sphi 0, %s111
    %s131 = sphi 0, %s133
    %s134 = sphi 0, %s131
    %s135 = sphi 0, %s134
    %s151 = sphi 0, %s135
  $region4: #{mlp_forward.1} parent=0 // loop_header_branch
    %14 = sbr.rel (%p12) target = $region8
  $region5: #{mlp_forward.1} parent=0 // loop_body
    %s16 = ssub.s32 %s11, 1
    %s17 = ssub.s32 %s11, 2
    %s18 = sadd.s32 %s11, 1
    %s19 = ssub.s32 %s11, %s18
    %p20 = scmp.eq.s32.totalorder %s19, 0
    %s22 = sadd.s32 %s21, 1
    %s23 = scalar_select %p20, %s21, %s22
    %p26 = pneg %p20
    %p27 = scmp.eq.s32.totalorder %s11, 1
    %p28 = por %p26, %p27
    %p29 = scmp.ne.s32.totalorder %s21, %s24
    %p30 = scmp.eq.s32.totalorder %s11, 0
    %p31 = por %p29, %p30
    %p32 = scmp.ne.s32.totalorder %s21, %s24
    %p33 = scmp.eq.s32.totalorder %s16, 1
    %p34 = por %p32, %p33
    %p35 = scmp.ne.s32.totalorder %s24, %s25
    %p36 = scmp.eq.s32.totalorder %s16, 0
    %p37 = por %p35, %p36
    %p38 = scmp.ne.s32.totalorder %s24, %s25
    %p39 = scmp.eq.s32.totalorder %s17, 1
    %p40 = por %p38, %p39
    %p42 = scmp.ne.s32.totalorder %s25, %s41
    %p43 = scmp.eq.s32.totalorder %s17, 0
    %p44 = por %p42, %p43
    %s46 = sadd.s32 %s45, 1
    %p49 = scmp.eq.s32.totalorder %s11, 1
    %p50 = scmp.ne.s32.totalorder %s45, %s47
    %p51 = scmp.eq.s32.totalorder %s11, 0
    %p52 = por %p50, %p51
    %p53 = scmp.ne.s32.totalorder %s45, %s47
    %p54 = scmp.eq.s32.totalorder %s16, 1
    %p55 = por %p53, %p54
    %p56 = scmp.ne.s32.totalorder %s47, %s48
    %p57 = scmp.eq.s32.totalorder %s16, 0
    %p58 = por %p56, %p57
    %p59 = scmp.ne.s32.totalorder %s47, %s48
    %p60 = scmp.eq.s32.totalorder %s17, 1
    %p61 = por %p59, %p60
    %p63 = scmp.ne.s32.totalorder %s48, %s62
    %p64 = scmp.eq.s32.totalorder %s17, 0
    %p65 = por %p63, %p64
    %s67 = sadd.s32 %s66, 1
    %p70 = scmp.eq.s32.totalorder %s11, 1
    %p71 = scmp.ne.s32.totalorder %s66, %s68
    %p72 = scmp.eq.s32.totalorder %s11, 0
    %p73 = por %p71, %p72
    %p74 = scmp.ne.s32.totalorder %s66, %s68
    %p75 = scmp.eq.s32.totalorder %s16, 1
    %p76 = por %p74, %p75
    %p77 = scmp.ne.s32.totalorder %s68, %s69
    %p78 = scmp.eq.s32.totalorder %s16, 0
    %p79 = por %p77, %p78
    %p80 = scmp.ne.s32.totalorder %s68, %s69
    %p81 = scmp.eq.s32.totalorder %s17, 1
    %p82 = por %p80, %p81
    %p84 = scmp.ne.s32.totalorder %s69, %s83
    %p85 = scmp.eq.s32.totalorder %s17, 0
    %p86 = por %p84, %p85
    %s88 = sadd.s32 %s87, 1
    %p91 = scmp.eq.s32.totalorder %s11, 1
    %p92 = scmp.ne.s32.totalorder %s87, %s89
    %p93 = scmp.eq.s32.totalorder %s11, 0
    %p94 = por %p92, %p93
    %p95 = scmp.ne.s32.totalorder %s87, %s89
    %p96 = scmp.eq.s32.totalorder %s16, 1
    %p97 = por %p95, %p96
    %p98 = scmp.ne.s32.totalorder %s89, %s90
    %p99 = scmp.eq.s32.totalorder %s16, 0
    %p100 = por %p98, %p99
    %p101 = scmp.ne.s32.totalorder %s89, %s90
    %p102 = scmp.eq.s32.totalorder %s17, 1
    %p103 = por %p101, %p102
    %p105 = scmp.ne.s32.totalorder %s90, %s104
    %p106 = scmp.eq.s32.totalorder %s17, 0
    %p107 = por %p105, %p106
    %s109 = sadd.s32 %s108, 1
    %p112 = scmp.eq.s32.totalorder %s11, 1
    %p113 = scmp.ne.s32.totalorder %s108, %s110
    %p114 = scmp.eq.s32.totalorder %s11, 0
    %p115 = por %p113, %p114
    %p116 = scmp.ne.s32.totalorder %s108, %s110
    %p117 = scmp.eq.s32.totalorder %s16, 1
    %p118 = por %p116, %p117
    %p119 = scmp.ne.s32.totalorder %s110, %s111
    %p120 = scmp.eq.s32.totalorder %s16, 0
    %p121 = por %p119, %p120
    %p122 = scmp.ne.s32.totalorder %s110, %s111
    %p123 = scmp.eq.s32.totalorder %s17, 1
    %p124 = por %p122, %p123
    %p126 = scmp.ne.s32.totalorder %s111, %s125
    %p127 = scmp.eq.s32.totalorder %s17, 0
    %p128 = por %p126, %p127
    %s129 = ssub.s32 %s11, %s18
    %p130 = scmp.eq.s32.totalorder %s129, 0
    %s132 = sadd.s32 %s131, 1
    %s133 = scalar_select %p130, %s131, %s132
    %p136 = pneg %p130
    %p137 = scmp.eq.s32.totalorder %s11, 1
    %p138 = por %p136, %p137
    %p139 = scmp.ne.s32.totalorder %s131, %s134
    %p140 = scmp.eq.s32.totalorder %s11, 0
    %p141 = por %p139, %p140
    %p142 = scmp.ne.s32.totalorder %s131, %s134
    %p143 = scmp.eq.s32.totalorder %s16, 1
    %p144 = por %p142, %p143
    %p145 = scmp.ne.s32.totalorder %s134, %s135
    %p146 = scmp.eq.s32.totalorder %s16, 0
    %p147 = por %p145, %p146
    %p148 = scmp.ne.s32.totalorder %s134, %s135
    %p149 = scmp.eq.s32.totalorder %s17, 1
    %p150 = por %p148, %p149
    %p152 = scmp.ne.s32.totalorder %s135, %s151
    %p153 = scmp.eq.s32.totalorder %s17, 0
    %p154 = por %p152, %p153
    %p155 = scmp.le.s32.totalorder 1, %s11
    %p156 = scmp.lt.s32.totalorder %s11, 3
    %p157 = pnand %p155, %p156
    %p158 = pneg %p157
    // Predicated region
    $region9: #{mlp_forward.1} parent=5 // pred_check
      _
    $region10: #{mlp_forward.1} parent=5 // pred_check_branch
      %160 = sbr.rel (%p157) target = $region12
    $region11: #{mlp_forward.1} parent=5 // pred_region
      %s161 = ssub.s32 %s11, 1
      // Predicated region
      $region13: #{mlp_forward.1} parent=11 // pred_check
        %p162 = pneg %p58
      $region14: #{mlp_forward.1} parent=11 // pred_check_branch
        %164 = sbr.rel (%p162) target = $region16
      $region15: #{mlp_forward.1} parent=11 // pred_region
        _
      $region16: #{mlp_forward.1} parent=11 // pred_fallthru
        _
      // Predicated region
      $region17: #{mlp_forward.1} parent=11 // pred_check
        %p165 = pneg %p79
      $region18: #{mlp_forward.1} parent=11 // pred_check_branch
        %167 = sbr.rel (%p165) target = $region20
      $region19: #{mlp_forward.1} parent=11 // pred_region
        _
      $region20: #{mlp_forward.1} parent=11 // pred_fallthru
        _
      // Predicated region
      $region21: #{mlp_forward.1} parent=11 // pred_check
        %p168 = pneg %p100
      $region22: #{mlp_forward.1} parent=11 // pred_check_branch
        %170 = sbr.rel (%p168) target = $region24
      $region23: #{mlp_forward.1} parent=11 // pred_region
        _
      $region24: #{mlp_forward.1} parent=11 // pred_fallthru
        _
      // Predicated region
      $region25: #{mlp_forward.1} parent=11 // pred_check
        %p171 = pneg %p121
      $region26: #{mlp_forward.1} parent=11 // pred_check_branch
        %173 = sbr.rel (%p171) target = $region28
      $region27: #{mlp_forward.1} parent=11 // pred_region
        _
      $region28: #{mlp_forward.1} parent=11 // pred_fallthru
        _
    $region12: #{mlp_forward.1} parent=5 // pred_fallthru
      _
    %p174 = scmp.lt.s32.totalorder %s11, 2
    // Predicated region
    $region29: #{mlp_forward.1} parent=5 // pred_check
      %p175 = pneg %p174
    $region30: #{mlp_forward.1} parent=5 // pred_check_branch
      %177 = sbr.rel (%p175) target = $region32
    $region31: #{mlp_forward.1} parent=5 // pred_region
      // Predicated region
      $region33: #{mlp_forward.1} parent=31 // pred_check
        %p178 = pneg %p31
      $region34: #{mlp_forward.1} parent=31 // pred_check_branch
        %180 = sbr.rel (%p178) target = $region36
      $region35: #{mlp_forward.1} parent=31 // pred_region
        %s181 = smul.u32 2, %s11
        %p182 = scmp.lt.s32.totalorder %s181, 3
        %s183 = scalar_select %p182, %s181, 3
        %s184 = smul.addr %s183, 8
        %s185 = scalar_lea.vmem %s0, %s184
        %s186 = smul.u32 2, %s11
      $region36: #{mlp_forward.1} parent=31 // pred_fallthru
        _
    $region32: #{mlp_forward.1} parent=5 // pred_fallthru
      _
    %p187 = scmp.le.s32.totalorder 1, %s11
    %p188 = scmp.lt.s32.totalorder %s11, 3
    %p189 = pnand %p187, %p188
    %p190 = pneg %p189
    // Predicated region
    $region37: #{mlp_forward.1} parent=5 // pred_check
      _
    $region38: #{mlp_forward.1} parent=5 // pred_check_branch
      %192 = sbr.rel (%p189) target = $region40
    $region39: #{mlp_forward.1} parent=5 // pred_region
      %s193 = ssub.s32 %s11, 1
      %s194 = smul.u32 2, %s16
      %p195 = scmp.lt.s32.totalorder %s194, 3
      %s196 = scalar_select %p195, %s194, 3
      %s197 = smul.addr %s196, 8
      %s198 = scalar_lea.vmem %s0, %s197
      %p199 = pneg %p37
      %p200 = pneg %p34
      %p201 = pneg %p58
      %p202 = pneg %p55
      %p203 = pneg %p79
      %p204 = pneg %p76
      %p205 = pneg %p100
      %p206 = pneg %p97
      %p207 = pneg %p121
      %p208 = pneg %p118
      %p209 = pneg %p147
      %p210 = pneg %p144
      %s211 = smul.u32 2, %s16
      %p212 = scmp.lt.s32.totalorder %s211, 3
      %s213 = scalar_select %p212, %s211, 3
      %s214 = smul.addr %s213, 8
      %s215 = scalar_lea.vmem %s5, %s214
      %s216 = smul.u32 2, %s16
      %p217 = scmp.lt.s32.totalorder %s216, 3
      %s218 = scalar_select %p217, %s216, 3
      %s219 = smul.addr %s218, 8
      %s220 = scalar_lea.vmem %s0, %s219
      %s221 = smul.u32 2, %s16
      %s222 = smul.u32 2, %s16
      %p223 = scmp.lt.s32.totalorder %s222, 3
      %s224 = scalar_select %p223, %s222, 3
      %s225 = smul.addr %s224, 8
      %s226 = scalar_lea.vmem %s5, %s225
      %s227 = smul.u32 2, %s16
      %v229 = vld [vmem:[%s220] sm:$0xff]
      %v230 = vld [vmem:[%s220 + $0x8] sm:$0xff]
      %v231 = vpack.c.bf16 %v230, %v229
      %v232 = vld [vmem:[%s1] sm:$0xf]
      %v233 = vld [vmem:[%s1 + $0x4] sm:$0xf]
      %v234 = vld [vmem:[%s1 + $0x8] sm:$0xf]
      %v235 = vld [vmem:[%s1 + $0xc] sm:$0xf]
      %v236 = vld [vmem:[%s2] sm:$0x1]
      %v238 = vlaneseq
      %v239 = vshrl.u32 %v238, 7
      %v240 = vsub.s32 0, %v239
      %v241 = vrot.slane %v236, %v240
      %v247 = vunpack.c.l.b16 %v232
      %v248 = vunpack.c.l.b16 %v233
      %v249 = vunpack.c.l.b16 %v234
      %v250 = vunpack.c.l.b16 %v235
      %v251 = vpack.c.b16 %v248, %v247
      %v252 = vpack.c.b16 %v250, %v249
      %vm255 = vcmask 261120
      %v257 = vsel %vm255, %v231, 0
      %259 = vmatprep.subr.bf16.mxu0 0
      %260 = vmatpush1.bf16.msra.mxu0 %v251
      %261 = vmatprep.subr.bf16.mxu0 0
      %262 = vmatpush1.bf16.msra.mxu0 %v252
      %263 = vmatprep.subr.bf16.mxu0 0
      %264 = vmatpush1.bf16.msra.mxu0 0
      %265 = vmatprep.subr.bf16.mxu0 0
      %266 = vmatpush1.bf16.msra.mxu0 0
      %267 = vmatprep.subr.bf16.mxu0 0
      %268 = vmatpush1.bf16.msra.mxu0 0
      %269 = vmatprep.subr.bf16.mxu0 0
      %270 = vmatpush1.bf16.msra.mxu0 0
      %271 = vmatprep.subr.bf16.mxu0 0
      %272 = vmatpush1.bf16.msra.mxu0 0
      %273 = vmatprep.subr.bf16.mxu0 0
      %274 = vmatpush1.bf16.msra.mxu0 0
      %275 = vmatprep.subr.bf16.mxu0 0
      %276 = vmatpush1.bf16.msra.mxu0 0
      %277 = vmatprep.subr.bf16.mxu0 0
      %278 = vmatpush1.bf16.msra.mxu0 0
      %279 = vmatprep.subr.bf16.mxu0 0
      %280 = vmatpush1.bf16.msra.mxu0 0
      %281 = vmatprep.subr.bf16.mxu0 0
      %282 = vmatpush1.bf16.msra.mxu0 0
      %283 = vmatprep.subr.bf16.mxu0 0
      %284 = vmatpush1.bf16.msra.mxu0 0
      %285 = vmatprep.subr.bf16.mxu0 0
      %286 = vmatpush1.bf16.msra.mxu0 0
      %287 = vmatprep.subr.bf16.mxu0 0
      %288 = vmatpush1.bf16.msra.mxu0 0
      %289 = vmatprep.subr.bf16.mxu0 0
      %290 = vmatpush1.bf16.msra.mxu0 0
      %291 = vmatprep.mubr.bf16.mxu0 0
      %292 = vmatmul.mubr.bf16.gmra.mrb[0].mxu0 %v257
      %v293 = vpop.f32.mrb[0].mxu0
      %v294 = vadd.f32 %v241, %v293
      %v295 = vpop.f32.mrb[0].mxu0
      %v296 = vpop.f32.mrb[0].mxu0
      %v297 = vadd.f32 %v241, %v296
      %v298 = vpop.f32.mrb[0].mxu0
      %299 = vdwg.mxu0
      %v300 = vand.u32 2147483647, %v294
      %v301 = vand.u32 2147483647, %v297
      %v302 = vmul.f32 %v300, 0.70710677
      %v303 = vmul.f32 %v301, 0.70710677
      %v304 = vmul.f32 %v302, 0.3275911
      %v305 = vmul.f32 %v303, 0.3275911
      %v306 = vadd.f32 %v304, 1.0
      %v307 = vadd.f32 %v305, 1.0
      %v308 = vrcp.pop %v306
      %v309 = vrcp.pop %v307
      %v310 = vmul.f32 %v308, 1.0614054
      %v311 = vmul.f32 %v309, 1.0614054
      %v312 = vsub.f32 %v310, 1.4531521
      %v313 = vsub.f32 %v311, 1.4531521
      %v314 = vmul.f32 %v312, %v308
      %v315 = vmul.f32 %v313, %v309
      %v316 = vadd.f32 %v314, 1.4214138
      %v317 = vadd.f32 %v315, 1.4214138
      %v318 = vmul.f32 %v316, %v308
      %v319 = vmul.f32 %v317, %v309
      %v320 = vsub.f32 %v318, 0.28449672
      %v321 = vsub.f32 %v319, 0.28449672
      %v322 = vmul.f32 %v320, %v308
      %v323 = vmul.f32 %v321, %v309
      %v324 = vadd.f32 %v322, 0.2548296
      %v325 = vadd.f32 %v323, 0.2548296
      %v326 = vmul.f32 %v324, %v308
      %v327 = vmul.f32 %v325, %v309
      %v328 = vsub.f32 0.0, %v302
      %v329 = vsub.f32 0.0, %v303
      %v330 = vmul.f32 %v328, %v302
      %v331 = vmul.f32 %v329, %v303
      %v332 = vmul.f32 %v330, 1.442695
      %v333 = vpow.pop %v332
      %v334 = vmul.f32 %v331, 1.442695
      %v335 = vpow.pop %v334
      %v336 = vmul.f32 %v326, %v333
      %v337 = vmul.f32 %v327, %v335
      %v338 = vsub.f32 1.0, %v336
      %v339 = vsub.f32 1.0, %v337
      %vm340 = vcmp.ge.f32.partialorder %v294, 0.0
      %vm341 = vcmp.ge.f32.partialorder %v297, 0.0
      %v342 = vsub.f32 0.0, %v338
      %v343 = vsub.f32 0.0, %v339
      %v344 = vsel %vm340, %v338, %v342
      %v345 = vsel %vm341, %v339, %v343
      %v346 = vmul.f32 %v344, 0.5
      %v347 = vmul.f32 %v345, 0.5
      %v348 = vadd.f32 %v346, 0.5
      %v349 = vadd.f32 %v347, 0.5
      %v350 = vmul.f32 %v294, %v348
      %v351 = vmul.f32 %v297, %v349
      %v352 = vpack.c.bf16 %v351, %v350
      %v353 = vld [vmem:[%s3] sm:$0xf]
      %v354 = vld [vmem:[%s3 + $0x4] sm:$0xf]
      %v355 = vld [vmem:[%s3 + $0x8] sm:$0xf]
      %v356 = vld [vmem:[%s3 + $0xc] sm:$0xf]
      %v357 = vld [vmem:[%s3 + $0x10] sm:$0xf]
      %v358 = vld [vmem:[%s3 + $0x14] sm:$0xf]
      %v359 = vld [vmem:[%s3 + $0x18] sm:$0xf]
      %v360 = vld [vmem:[%s3 + $0x1c] sm:$0xf]
      %v361 = vld [vmem:[%s3 + $0x20] sm:$0xf]
      %v362 = vld [vmem:[%s3 + $0x24] sm:$0xf]
      %v363 = vld [vmem:[%s3 + $0x28] sm:$0xf]
      %v364 = vld [vmem:[%s3 + $0x2c] sm:$0xf]
      %v365 = vld [vmem:[%s3 + $0x30] sm:$0xf]
      %v366 = vld [vmem:[%s3 + $0x34] sm:$0xf]
      %v367 = vld [vmem:[%s3 + $0x38] sm:$0xf]
      %v368 = vld [vmem:[%s3 + $0x3c] sm:$0xf]
      %v369 = vld [vmem:[%s4] sm:$0x1]
      %v371 = vlaneseq
      %v372 = vshrl.u32 %v371, 7
      %v373 = vsub.s32 0, %v372
      %v374 = vrot.slane %v369, %v373
      %v392 = vunpack.c.l.b16 %v353
      %v393 = vunpack.c.l.b16 %v354
      %v394 = vunpack.c.l.b16 %v355
      %v395 = vunpack.c.l.b16 %v356
      %v396 = vunpack.c.l.b16 %v357
      %v397 = vunpack.c.l.b16 %v358
      %v398 = vunpack.c.l.b16 %v359
      %v399 = vunpack.c.l.b16 %v360
      %v400 = vunpack.c.l.b16 %v361
      %v401 = vunpack.c.l.b16 %v362
      %v402 = vunpack.c.l.b16 %v363
      %v403 = vunpack.c.l.b16 %v364
      %v404 = vunpack.c.l.b16 %v365
      %v405 = vunpack.c.l.b16 %v366
      %v406 = vunpack.c.l.b16 %v367
      %v407 = vunpack.c.l.b16 %v368
      %v408 = vpack.c.b16 %v393, %v392
      %v409 = vpack.c.b16 %v395, %v394
      %v410 = vpack.c.b16 %v397, %v396
      %v411 = vpack.c.b16 %v399, %v398
      %v412 = vpack.c.b16 %v401, %v400
      %v413 = vpack.c.b16 %v403, %v402
      %v414 = vpack.c.b16 %v405, %v404
      %v415 = vpack.c.b16 %v407, %v406
      %424 = vmatprep.subr.bf16.mxu0 0
      %425 = vmatpush1.bf16.msra.mxu0 %v408
      %426 = vmatprep.subr.bf16.mxu0 0
      %427 = vmatpush1.bf16.msra.mxu0 %v409
      %428 = vmatprep.subr.bf16.mxu0 0
      %429 = vmatpush1.bf16.msra.mxu0 %v410
      %430 = vmatprep.subr.bf16.mxu0 0
      %431 = vmatpush1.bf16.msra.mxu0 %v411
      %432 = vmatprep.subr.bf16.mxu0 0
      %433 = vmatpush1.bf16.msra.mxu0 %v412
      %434 = vmatprep.subr.bf16.mxu0 0
      %435 = vmatpush1.bf16.msra.mxu0 %v413
      %436 = vmatprep.subr.bf16.mxu0 0
      %437 = vmatpush1.bf16.msra.mxu0 %v414
      %438 = vmatprep.subr.bf16.mxu0 0
      %439 = vmatpush1.bf16.msra.mxu0 %v415
      %440 = vmatprep.subr.bf16.mxu0 0
      %441 = vmatpush1.bf16.msra.mxu0 0
      %442 = vmatprep.subr.bf16.mxu0 0
      %443 = vmatpush1.bf16.msra.mxu0 0
      %444 = vmatprep.subr.bf16.mxu0 0
      %445 = vmatpush1.bf16.msra.mxu0 0
      %446 = vmatprep.subr.bf16.mxu0 0
      %447 = vmatpush1.bf16.msra.mxu0 0
      %448 = vmatprep.subr.bf16.mxu0 0
      %449 = vmatpush1.bf16.msra.mxu0 0
      %450 = vmatprep.subr.bf16.mxu0 0
      %451 = vmatpush1.bf16.msra.mxu0 0
      %452 = vmatprep.subr.bf16.mxu0 0
      %453 = vmatpush1.bf16.msra.mxu0 0
      %454 = vmatprep.subr.bf16.mxu0 0
      %455 = vmatpush1.bf16.msra.mxu0 0
      %456 = vmatprep.mubr.bf16.mxu0 0
      %457 = vmatmul.mubr.bf16.gmra.mrb[0].mxu0 %v352
      %v458 = vpop.f32.mrb[0].mxu0
      %v459 = vadd.f32 %v374, %v458
      %v460 = vpop.f32.mrb[0].mxu0
      %v461 = vpop.f32.mrb[0].mxu0
      %v462 = vadd.f32 %v374, %v461
      %v463 = vpop.f32.mrb[0].mxu0
      %464 = vdwg.mxu0
      %465 = vst.msk [vmem:[%s226] sm:$0xff] %vm255, %v459
      %466 = vst.msk [vmem:[%s226 + $0x8] sm:$0xff] %vm255, %v462
      %s467 = smul.u32 2, %s16
      %p468 = scmp.lt.s32.totalorder %s467, 3
      %s469 = scalar_select %p468, %s467, 3
      %s470 = smul.addr %s469, 8
      %s471 = scalar_lea.vmem %s5, %s470
      // Predicated region
      $region41: #{mlp_forward.1} parent=39 // pred_check
        %p472 = pneg %p144
      $region42: #{mlp_forward.1} parent=39 // pred_check_branch
        %474 = sbr.rel (%p472) target = $region44
      $region43: #{mlp_forward.1} parent=39 // pred_region
        %s475 = smul.u32 2, %s16
      $region44: #{mlp_forward.1} parent=39 // pred_fallthru
        _
    $region40: #{mlp_forward.1} parent=5 // pred_fallthru
      _
    %p476 = scmp.le.s32.totalorder 2, %s11
    // Predicated region
    $region45: #{mlp_forward.1} parent=5 // pred_check
      %p477 = pneg %p476
    $region46: #{mlp_forward.1} parent=5 // pred_check_branch
      %479 = sbr.rel (%p477) target = $region48
    $region47: #{mlp_forward.1} parent=5 // pred_region
      %s480 = ssub.s32 %s11, 2
      // Predicated region
      $region49: #{mlp_forward.1} parent=47 // pred_check
        %p481 = pneg %p150
      $region50: #{mlp_forward.1} parent=47 // pred_check_branch
        %483 = sbr.rel (%p481) target = $region52
      $region51: #{mlp_forward.1} parent=47 // pred_region
        %s484 = smul.u32 2, %s17
        %p485 = scmp.lt.s32.totalorder %s484, 3
        %s486 = scalar_select %p485, %s484, 3
        %s487 = smul.addr %s486, 8
        %s488 = scalar_lea.vmem %s5, %s487
      $region52: #{mlp_forward.1} parent=47 // pred_fallthru
        _
    $region48: #{mlp_forward.1} parent=5 // pred_fallthru
      _
  $region6: #{mlp_forward.1} parent=0 // loop_footer
    %s15 = sadd.s32 1, %s11
  $region7: #{mlp_forward.1} parent=0 // loop_footer_branch
    %10 = sbr.rel target = $region3
  $region8: #{mlp_forward.1} parent=0 // loop_exit
    _

</llo_original>
